<compile_context>
chip_gen: v7x
topology: tpu7x:2x2x1
jax: 0.10.0
libtpu: 0.0.40
codegen_flags: <defaults>
</compile_context>

<pallas_src>
import jax
import jax.numpy as jnp
from jax.experimental import pallas as pl
from jax.experimental.pallas import tpu as pltpu

_LANE = 128
_SUBLANE = 8
_DEFAULT_VMEM_BUDGET = 16 * 1024 * 1024   # tile budget: (in + out) x double-buffer
_VMEM_LIMIT_BYTES = 32 * 1024 * 1024      # scoped VMEM limit, safe on v5e/v6e/v7x
_LANE_BLOCK_MAX = 4096                    # max columns per tile (multiple of 128)


# ----------------------------------------------------------------------------
# Kernel: elementwise non-padding mask for one tile.
# ----------------------------------------------------------------------------
def _input_mask_kernel(x_ref, o_ref):
    # (x != 0) -> f32 in one VPU pass, written straight to the output tile.
    o_ref[...] = (x_ref[...] != 0).astype(jnp.float32)


# ----------------------------------------------------------------------------
# Tiling helpers.
# ----------------------------------------------------------------------------
def _round_up(v, m):
    return ((v + m - 1) // m) * m


def _round_down(v, m):
    return (v // m) * m


def _row_tile(rows, cols, in_bytes, budget_bytes):
    """Sublane (row) tile size for a (rows, cols) elementwise kernel.

    footprint = (in_bytes + 4[out f32]) * 2[double-buffer] * row_tile * cols
    is kept under `budget_bytes`.
    """
    if rows <= _SUBLANE:
        return int(rows)                         # full extent -> always legal
    per_row = (in_bytes + 4) * 2 * cols
    rb = budget_bytes // per_row
    rb = max(_SUBLANE, _round_down(min(rb, rows), _SUBLANE))
    return int(rb)


def _force_multi_step(rows, rb, other_grid):
    """Guarantee >=2 grid steps (ideally 4) so v7x's 2nd TC isn't left idle."""
    if other_grid * pl.cdiv(rows, rb) > 1 or rows < 2 * _SUBLANE:
        return int(rb)
    desired = 4 if rows >= 8 * _SUBLANE else 2
    return int(min(rb, _round_up(pl.cdiv(rows, desired), _SUBLANE)))


def _compiler_params(num_grid_axes):
    return pltpu.CompilerParams(
        dimension_semantics=("parallel",) * num_grid_axes,
        vmem_limit_bytes=_VMEM_LIMIT_BYTES,
    )


# ----------------------------------------------------------------------------
# Two layout paths.
# ----------------------------------------------------------------------------
def _mask_2d_tiled(x, budget_bytes):
    """S >= 128: tile (B, S) directly; S stays on the lane axis."""
    B, S = x.shape
    in_bytes = x.dtype.itemsize

    bs = S if S <= _LANE_BLOCK_MAX else _LANE_BLOCK_MAX   # multiple of 128 or full
    gs = pl.cdiv(S, bs)

    bb = _row_tile(B, bs, in_bytes, budget_bytes)
    bb = _force_multi_step(B, bb, gs)
    gb = pl.cdiv(B, bb)

    return pl.pallas_call(
        _input_mask_kernel,
        out_shape=jax.ShapeDtypeStruct((B, S), jnp.float32),
        grid=(gb, gs),
        in_specs=[pl.BlockSpec((bb, bs), lambda i, j: (i, j))],
        out_specs=pl.BlockSpec((bb, bs), lambda i, j: (i, j)),
        compiler_params=_compiler_params(2),
        cost_estimate=pl.CostEstimate(
            flops=0, transcendentals=0,
            bytes_accessed=B * S * (in_bytes + 4)),
    )(x)


def _mask_lane_dense(x, budget_bytes):
    """S < 128: flatten to a lane-dense (rows, 128) layout.

    Zero-padded tail elements produce mask 0 and are sliced off before the
    reshape back to (B, S), so padded lanes never reach the real output.
    """
    B, S = x.shape
    in_bytes = x.dtype.itemsize
    total = B * S
    rows = pl.cdiv(total, _LANE)
    padded = rows * _LANE

    flat = x.reshape(-1)
    if padded != total:
        flat = jnp.pad(flat, (0, padded - total))
    x2 = flat.reshape(rows, _LANE)

    rb = _row_tile(rows, _LANE, in_bytes, budget_bytes)
    rb = _force_multi_step(rows, rb, 1)

    out = pl.pallas_call(
        _input_mask_kernel,
        out_shape=jax.ShapeDtypeStruct((rows, _LANE), jnp.float32),
        grid=(pl.cdiv(rows, rb),),
        in_specs=[pl.BlockSpec((rb, _LANE), lambda i: (i, 0))],
        out_specs=pl.BlockSpec((rb, _LANE), lambda i: (i, 0)),
        compiler_params=_compiler_params(1),
        cost_estimate=pl.CostEstimate(
            flops=0, transcendentals=0,
            bytes_accessed=padded * (in_bytes + 4)),
    )(x2)

    return out.reshape(-1)[:total].reshape(B, S)


# ----------------------------------------------------------------------------
# Public wrapper: InputMask.forward
# ----------------------------------------------------------------------------
def input_mask(x, *, vmem_budget_bytes=_DEFAULT_VMEM_BUDGET):
    """Pallas InputMask forward.

    Args:
      x: (B, S) array (any integer or float dtype); 0 marks padding.
      vmem_budget_bytes: VMEM byte budget for the (double-buffered) tiles.

    Returns:
      (B, 1, S) float32 mask, identical to `(x != 0).float().unsqueeze(1)`.
    """
    B, S = x.shape
    if S < _LANE:
        mask2d = _mask_lane_dense(x, vmem_budget_bytes)
    else:
        mask2d = _mask_2d_tiled(x, vmem_budget_bytes)
    # torch's mask.unsqueeze(1): free reshape, no data movement.
    return mask2d[:, None, :]


# ----------------------------------------------------------------------------
# Pure-JAX reference (mirrors the PyTorch forward).
# ----------------------------------------------------------------------------
def ref_input_mask(x):
    return (x != 0).astype(jnp.float32)[:, None, :]


if __name__ == "__main__":
    key = jax.random.PRNGKey(0)

    # Spec-consistent small shape: (batch=2, seq=8) padded id sequence.
    B, S = 2, 8
    x = jax.random.randint(key, (B, S), 0, 5, dtype=jnp.int32)
    out = jax.block_until_ready(input_mask(x))
    expected = ref_input_mask(x)
    assert out.shape == (B, 1, S), out.shape
    assert out.dtype == jnp.float32, out.dtype
    assert jnp.array_equal(out, expected), "mismatch vs reference (small)"

    # 2-D tiled path (S >= 128) with a forced multi-step batch grid.
    xa = jax.random.randint(jax.random.PRNGKey(1), (64, 256), 0, 3, dtype=jnp.int32)
    assert jnp.array_equal(jax.block_until_ready(input_mask(xa)),
                           ref_input_mask(xa)), "mismatch vs reference (tiled)"

    # Ragged batch tail + non-multiple-of-128 S (full-extent lane block).
    xb = jax.random.randint(jax.random.PRNGKey(2), (37, 200), 0, 3, dtype=jnp.int32)
    assert jnp.array_equal(jax.block_until_ready(input_mask(xb)),
                           ref_input_mask(xb)), "mismatch vs reference (ragged)"

    # Lane-dense flattened path whose tail padding must be sliced off.
    xc = jax.random.randint(jax.random.PRNGKey(3), (3, 50), 0, 2, dtype=jnp.int32)
    assert jnp.array_equal(jax.block_until_ready(input_mask(xc)),
                           ref_input_mask(xc)), "mismatch vs reference (lane-dense)"

    # Float input incl. -0.0 (-> 0.0) and NaN (-> 1.0), matching torch semantics.
    xf = jnp.array([[0.0, -0.0, 1.5, float("nan"), 2.0, 0.0, -3.0, 7.0]],
                   dtype=jnp.float32)
    assert jnp.array_equal(jax.block_until_ready(input_mask(xf)),
                           ref_input_mask(xf)), "mismatch vs reference (float)"

    print("KERNEL_OK")
</pallas_src>

<mosaic_0001>
module attributes {stable_mosaic.version = 11 : i64} {
  func.func @_input_mask_kernel(%arg0: i32, %arg1: memref<1x128xi32, #tpu.memory_space<vmem>>, %arg2: memref<1x128xf32, #tpu.memory_space<vmem>>) attributes {dimension_semantics = [#tpu.dimension_semantics<parallel>], iteration_bounds = array<i64: 1>, scalar_prefetch = 0 : i64, scratch_operands = 0 : i64, tpu.core_type = #tpu.core_type<tc>, window_params = [{transform_indices = @transform_0, window_bounds = array<i64: 1, 128>}, {transform_indices = @transform_1, window_bounds = array<i64: 1, 128>}]} {
    %c0 = arith.constant 0 : index
    %c0_0 = arith.constant 0 : index
    %0 = vector.load %arg1[%c0, %c0_0] : memref<1x128xi32, #tpu.memory_space<vmem>>, vector<1x128xi32>
    %c0_i32 = arith.constant 0 : i32
    %1 = vector.broadcast %c0_i32 : i32 to vector<1x128xi32>
    %2 = arith.cmpi ne, %0, %1 : vector<1x128xi32>
    %3 = arith.extui %2 : vector<1x128xi1> to vector<1x128xi32>
    %4 = arith.sitofp %3 : vector<1x128xi32> to vector<1x128xf32>
    %c0_1 = arith.constant 0 : index
    %c0_2 = arith.constant 0 : index
    %5 = vector.load %arg2[%c0_1, %c0_2] : memref<1x128xf32, #tpu.memory_space<vmem>>, vector<1x128xf32>
    tpu.vector_store %arg2[%c0_1, %c0_2], %4 {strides = array<i32>} : memref<1x128xf32, #tpu.memory_space<vmem>>, vector<1x128xf32>,
    return
  }
  func.func @transform_0(%arg0: i32) -> (i32, i32) {
    %c0_i32 = arith.constant 0 : i32
    %c0_i32_0 = arith.constant 0 : i32
    return %arg0, %c0_i32 : i32, i32
  }
  func.func @transform_1(%arg0: i32) -> (i32, i32) {
    %c0_i32 = arith.constant 0 : i32
    %c0_i32_0 = arith.constant 0 : i32
    return %arg0, %c0_i32 : i32, i32
  }
}

</mosaic_0001>

<llo_original>
// kernel: tpu_custom_call.1
$region0: #{tpu_custom_call.1}
  #allocation0 [shape = 'u32[]', space=smem, size = 0x4, offset = 0x4, fixed_abs, tag = 'smem constant byte address 0x4 - core index']
  #allocation1 [shape = 'u32[144,128]{1,0:T(1,128)}', space=vmem, size = 0x12000, scoped, tag = 'internal scratch']
  %s0 = inlined_call_operand.hbm [shape: s32[1,128], index: 0, kind: input, shape index: {}]
  %s1 = inlined_call_operand.hbm [shape: f32[1,128], index: 1, kind: output, shape index: {}]
  %s2 = sld [smem:[#allocation0]]
  $region18: #{tpu_custom_call.1} parent=0
    _
  %s4 = ssub.s32 1, %s2
  %s5 = scalar_select 0, %s4, %s2
  $region1: #{tpu_custom_call.1} parent=0
    #allocation2 [shape = 'u8[512]{0}', space=vmem, size = 0x400, scoped, tag = 'input window, operand 0, single buffered']
    #allocation3 [shape = 's32[1]{0}', space=sflag, size = 0x4, scoped, tag = 'scoped memory for tpu_custom_call.1']
    #allocation4 [shape = 's32[1]{0}', space=sflag, size = 0x4, scoped, tag = 'scoped memory for tpu_custom_call.1']
    #allocation5 [shape = 'u8[512]{0}', space=vmem, size = 0x400, scoped, tag = 'output window, operand 0, single buffered']
    %6 = vsyncpa [#allocation3], 0
    %7 = vsyncpa [#allocation4], 0
    // Predicated region
    $region2: #{tpu_custom_call.1} parent=1 // pred_check
      _
    $region3: #{tpu_custom_call.1} parent=1 // pred_check_branch
      %9 = sbr.rel (0) target = $region5
    $region4: #{tpu_custom_call.1} parent=1 // pred_region
      %s11 = ssub.s32 16, 16
      %12 = vsyncadd [#allocation3], %s11
      %s14 = sshll.u32 [#allocation2], 4
      %s15 = int_to_ptr.vmem [resolvable:$true] %s14
      %17 = dma.hbm_to_vmem [thread:$0]  %s0, 16, %s15, [#allocation3]
    $region5: #{tpu_custom_call.1} parent=1 // pred_fallthru
      _
    // Predicated region
    $region6: #{tpu_custom_call.1} parent=1 // pred_check
      _
    $region7: #{tpu_custom_call.1} parent=1 // pred_check_branch
      %19 = sbr.rel (0) target = $region9
    $region8: #{tpu_custom_call.1} parent=1 // pred_region
      %20 = dma.done [#allocation3], 16
    $region9: #{tpu_custom_call.1} parent=1 // pred_fallthru
      _
    %v21 = vld [vmem:[#allocation2] sm:$0x1]
    %vm22 = vcmp.ne.s32.totalorder %v21, 0
    %v23 = vsel %vm22, 1, 0
    %v24 = vcvt.s32.f32 %v23
    %25 = vst [vmem:[#allocation5] sm:$0x1] %v24
    // Predicated region
    $region10: #{tpu_custom_call.1} parent=1 // pred_check
      _
    $region11: #{tpu_custom_call.1} parent=1 // pred_check_branch
      %27 = sbr.rel (0) target = $region13
    $region12: #{tpu_custom_call.1} parent=1 // pred_region
      %s29 = ssub.s32 16, 16
      %30 = vsyncadd [#allocation4], %s29
      %s32 = sshll.u32 [#allocation5], 4
      %s33 = int_to_ptr.vmem [resolvable:$true] %s32
      %35 = dma.vmem_to_hbm [thread:$0]  %s33, 16, %s1, [#allocation4]
    $region13: #{tpu_custom_call.1} parent=1 // pred_fallthru
      _
    // Predicated region
    $region14: #{tpu_custom_call.1} parent=1 // pred_check
      _
    $region15: #{tpu_custom_call.1} parent=1 // pred_check_branch
      %37 = sbr.rel (0) target = $region17
    $region16: #{tpu_custom_call.1} parent=1 // pred_region
      %38 = dma.done [#allocation4], 16
    $region17: #{tpu_custom_call.1} parent=1 // pred_fallthru
      _
    %39 = vsyncpa [#allocation3], 1
    %40 = vsyncpa [#allocation4], 1

</llo_original>
